<compile_context>
chip_gen: v5e
topology: v5e:2x2
jax: 0.10.0
libtpu: 0.0.40
codegen_flags: <defaults>
</compile_context>

<pallas_src>
import functools
import math

import jax
import jax.numpy as jnp
from jax import lax
from jax.experimental import pallas as pl
from jax.experimental.pallas import tpu as pltpu

EPS = 1e-5


# ---------------------------------------------------------------------------
# Fused kernel: conv (1 MXU contraction) + BN stats + normalize + ReLU.
# ---------------------------------------------------------------------------
def fused_coordconv_kernel(x3_ref, wb_ref, g_ref, o_ref, *, inv_n):
    # x3_ref: (B*H, 3*Kp) bf16  lane-packed padded input, 3 ky taps pre-concatenated on K
    # wb_ref: (3*Kp, N)   bf16  banded conv weight, N = W*Cout (lane-dense)
    # g_ref : (N, N)      f32   fold+broadcast matrix: G[i, j] = (i % Cout == j % Cout)
    # o_ref : (B*H, N)    f32   BatchNorm(train) + ReLU output, lane-dense
    y = jnp.dot(x3_ref[...], wb_ref[...], preferred_element_type=jnp.float32)  # (BH, N) f32

    # Single-pass statistics over (B, H) on sublanes, then fold over w / broadcast to lanes.
    lane_sum = jnp.sum(y, axis=0, keepdims=True)                                # (1, N)
    lane_sq = jnp.sum(y * y, axis=0, keepdims=True)                             # (1, N)
    sum_b = jnp.dot(lane_sum, g_ref[...], preferred_element_type=jnp.float32)   # (1, N)
    sq_b = jnp.dot(lane_sq, g_ref[...], preferred_element_type=jnp.float32)     # (1, N)

    mean = sum_b * inv_n
    var = jnp.maximum(sq_b * inv_n - mean * mean, 0.0)   # biased batch variance (train mode)
    inv = lax.rsqrt(var + EPS)                           # EUP

    o_ref[...] = jnp.maximum((y - mean) * inv, 0.0).astype(o_ref.dtype)


# ---------------------------------------------------------------------------
# Host-side helpers / wrapper
# ---------------------------------------------------------------------------
def add_coord(x_nchw):
    """Reproduce CoordConv.add_coord: concat [x_coord, y_coord] channels."""
    B, C, H, W = x_nchw.shape
    x_range = jnp.linspace(-1.0, 1.0, W, dtype=x_nchw.dtype)
    y_range = jnp.linspace(-1.0, 1.0, H, dtype=x_nchw.dtype)
    yy = jnp.broadcast_to(y_range[:, None], (H, W))            # y[i, j] = y_range[i]
    xx = jnp.broadcast_to(x_range[None, :], (H, W))            # x[i, j] = x_range[j]
    coord = jnp.stack([xx, yy], axis=0)                        # (2, H, W): [x, y]
    coord = jnp.broadcast_to(coord[None], (B, 2, H, W))
    return jnp.concatenate([x_nchw, coord], axis=1)            # (B, C+2, H, W)


def pack_weights(weight, W):
    """Weight-only banded expansion + lane-fold matrix. Build ONCE outside jit.

    wb3[dy*Kp + (w+dx)*Cin + c, w*Cout + co] = weight[co, c, dy, dx]
    """
    Cout, Cin, kh, kw = weight.shape
    assert (kh, kw) == (3, 3)
    Kp = (W + 2) * Cin
    N = W * Cout
    sel = jnp.stack([jnp.eye(W + 2, W, k=-dx, dtype=jnp.float32) for dx in range(3)])  # (3, W+2, W)
    wt = jnp.transpose(weight, (2, 3, 1, 0)).astype(jnp.float32)                       # (ky, kx, Cin, Cout)
    wb3 = jnp.einsum("xiw,yxco->yicwo", sel, wt).reshape(3 * Kp, N).astype(jnp.bfloat16)
    ids = jnp.arange(N, dtype=jnp.int32) % Cout
    g_fold = (ids[:, None] == ids[None, :]).astype(jnp.float32)                        # (N, N)
    return wb3, g_fold


def coord_conv_forward(x_nchw, wb3, g_fold):
    """CoordConv.forward. x_nchw: (B, C, H, W); wb3/g_fold from pack_weights(weight, W).

    The Conv2d bias is intentionally dropped: training-mode BatchNorm (beta=0) subtracts the
    batch mean right after the conv, so a per-channel constant bias cancels exactly.
    """
    B, C, H, W = x_nchw.shape
    Cin = C + 2
    Kp = (W + 2) * Cin
    K3, N = wb3.shape
    assert K3 == 3 * Kp
    Cout = N // W
    BH = B * H

    # Coord concat + NHWC + spatial zero pad + lane packing + ky-tap K-concat (tiny XLA glue).
    x_cat = add_coord(x_nchw)                                   # (B, Cin, H, W)
    x_nhwc = jnp.transpose(x_cat, (0, 2, 3, 1))                 # (B, H, W, Cin)
    x_pad = jnp.pad(x_nhwc, ((0, 0), (1, 1), (1, 1), (0, 0)))   # (B, H+2, W+2, Cin)
    x_rows = x_pad.reshape(B, H + 2, Kp)
    x3 = jnp.concatenate(
        [x_rows[:, 0:H], x_rows[:, 1:H + 1], x_rows[:, 2:H + 2]], axis=-1
    ).reshape(BH, K3).astype(jnp.bfloat16)                      # (B*H, 3*Kp)

    kernel = functools.partial(fused_coordconv_kernel, inv_n=1.0 / (B * H * W))

    out_ld = pl.pallas_call(
        kernel,
        out_shape=jax.ShapeDtypeStruct((BH, N), jnp.float32),
        grid_spec=pltpu.PrefetchScalarGridSpec(
            num_scalar_prefetch=0,
            grid=(1,),                                          # single fused step; see TODO(synk)
            in_specs=[
                pl.BlockSpec((BH, K3), lambda i: (0, 0)),
                pl.BlockSpec((K3, N), lambda i: (0, 0)),
                pl.BlockSpec((N, N), lambda i: (0, 0)),
            ],
            out_specs=pl.BlockSpec((BH, N), lambda i: (0, 0)),
        ),
        compiler_params=pltpu.CompilerParams(
            dimension_semantics=("arbitrary",),
            vmem_limit_bytes=32 * 1024 * 1024,                  # v7x scoped-VMEM-safe; working set < 1 MiB
        ),
    )(x3, wb3, g_fold)

    out_nhwc = out_ld.reshape(B, H, W, Cout)                    # lane axis was (w, cout) packed
    return jnp.transpose(out_nhwc, (0, 3, 1, 2))                # NHWC -> NCHW


def init_params(key, in_channels, out_channels):
    """Deterministic params matching the module shapes: xavier_uniform weight, default Conv2d bias."""
    fan_in = in_channels * 9
    fan_out = out_channels * 9
    gain_bound = math.sqrt(6.0 / (fan_in + fan_out))
    kw, kb = jax.random.split(key)
    weight = jax.random.uniform(
        kw, (out_channels, in_channels, 3, 3), jnp.float32, -gain_bound, gain_bound
    )
    bias_bound = 1.0 / math.sqrt(fan_in)
    bias = jax.random.uniform(kb, (out_channels,), jnp.float32, -bias_bound, bias_bound)
    return weight, bias


def reference_forward(x_nchw, weight, bias):
    """Pure-JAX f32 reference (lax conv) with identical semantics, for validation."""
    x_cat = add_coord(x_nchw)
    y = lax.conv_general_dilated(
        x_cat, weight, window_strides=(1, 1), padding=((1, 1), (1, 1)),
        dimension_numbers=("NCHW", "OIHW", "NCHW"),
    ) + bias[None, :, None, None]
    mean = jnp.mean(y, axis=(0, 2, 3), keepdims=True)
    var = jnp.mean((y - mean) ** 2, axis=(0, 2, 3), keepdims=True)
    y = (y - mean) * lax.rsqrt(var + EPS)
    return jnp.maximum(y, 0.0)


if __name__ == "__main__":
    key = jax.random.PRNGKey(0)
    kx, kp = jax.random.split(key)

    B, C, H, W = 2, 4, 16, 16
    OUT_CHANNELS = 8
    IN_CHANNELS = C + 2  # CoordConv must be constructed with in_channels = C + 2

    x = jax.random.normal(kx, (B, C, H, W), jnp.float32)
    weight, bias = init_params(kp, IN_CHANNELS, OUT_CHANNELS)

    # Banded-weight expansion + fold matrix are weight-only: build once, outside jit.
    wb3, g_fold = pack_weights(weight, W)

    fwd = jax.jit(coord_conv_forward)
    out = jax.block_until_ready(fwd(x, wb3, g_fold))

    ref = reference_forward(x, weight, bias)
    assert out.shape == (B, OUT_CHANNELS, H, W)
    # bf16 MXU conv operands (f32 accumulation / epilogue) -> compare at bf16-level tolerance.
    assert jnp.allclose(out, ref, atol=2e-2, rtol=2e-2)

    print("KERNEL_OK")
</pallas_src>

<mosaic_0001>
module attributes {stable_mosaic.version = 11 : i64} {
  func.func @fused_coordconv_kernel(%arg0: i32, %arg1: memref<32x324xbf16, #tpu.memory_space<vmem>>, %arg2: memref<324x128xbf16, #tpu.memory_space<vmem>>, %arg3: memref<128x128xf32, #tpu.memory_space<vmem>>, %arg4: memref<32x128xf32, #tpu.memory_space<vmem>>) attributes {dimension_semantics = [#tpu.dimension_semantics<arbitrary>], iteration_bounds = array<i64: 1>, scalar_prefetch = 0 : i64, scratch_operands = 0 : i64, tpu.core_type = #tpu.core_type<tc>, window_params = [{pipeline_mode = #tpu.pipeline_mode<synchronous>, transform_indices = @transform_0, window_bounds = array<i64: 32, 324>}, {pipeline_mode = #tpu.pipeline_mode<synchronous>, transform_indices = @transform_1, window_bounds = array<i64: 324, 128>}, {pipeline_mode = #tpu.pipeline_mode<synchronous>, transform_indices = @transform_2, window_bounds = array<i64: 128, 128>}, {pipeline_mode = #tpu.pipeline_mode<synchronous>, transform_indices = @transform_3, window_bounds = array<i64: 32, 128>}]} {
    %c0 = arith.constant 0 : index
    %c0_0 = arith.constant 0 : index
    %0 = vector.load %arg1[%c0, %c0_0] : memref<32x324xbf16, #tpu.memory_space<vmem>>, vector<32x324xbf16>
    %c0_1 = arith.constant 0 : index
    %c0_2 = arith.constant 0 : index
    %1 = vector.load %arg2[%c0_1, %c0_2] : memref<324x128xbf16, #tpu.memory_space<vmem>>, vector<324x128xbf16>
    %cst = arith.constant dense<0.000000e+00> : vector<32x128xf32>
    %2 = tpu.matmul %0, %1, %cst {dimension_numbers = #tpu.dot_dimension_numbers<[1], [0], [0], [1], [0, 0, 1, 1], [], []>} : vector<32x324xbf16>, vector<324x128xbf16>, vector<32x128xf32> -> vector<32x128xf32>
    %cst_3 = arith.constant dense<0.000000e+00> : vector<128xf32>
    %3 = vector.multi_reduction <add>, %2, %cst_3 [0] : vector<32x128xf32> to vector<128xf32>
    %4 = vector.shape_cast %3 : vector<128xf32> to vector<1x128xf32>
    %5 = arith.mulf %2, %2 : vector<32x128xf32>
    %cst_4 = arith.constant dense<0.000000e+00> : vector<128xf32>
    %6 = vector.multi_reduction <add>, %5, %cst_4 [0] : vector<32x128xf32> to vector<128xf32>
    %7 = vector.shape_cast %6 : vector<128xf32> to vector<1x128xf32>
    %c0_5 = arith.constant 0 : index
    %c0_6 = arith.constant 0 : index
    %8 = vector.load %arg3[%c0_5, %c0_6] : memref<128x128xf32, #tpu.memory_space<vmem>>, vector<128x128xf32>
    %cst_7 = arith.constant dense<0.000000e+00> : vector<1x128xf32>
    %9 = tpu.matmul %4, %8, %cst_7 {dimension_numbers = #tpu.dot_dimension_numbers<[1], [0], [0], [1], [0, 0, 1, 1], [], []>} : vector<1x128xf32>, vector<128x128xf32>, vector<1x128xf32> -> vector<1x128xf32>
    %c0_8 = arith.constant 0 : index
    %c0_9 = arith.constant 0 : index
    %10 = vector.load %arg3[%c0_8, %c0_9] : memref<128x128xf32, #tpu.memory_space<vmem>>, vector<128x128xf32>
    %cst_10 = arith.constant dense<0.000000e+00> : vector<1x128xf32>
    %11 = tpu.matmul %7, %10, %cst_10 {dimension_numbers = #tpu.dot_dimension_numbers<[1], [0], [0], [1], [0, 0, 1, 1], [], []>} : vector<1x128xf32>, vector<128x128xf32>, vector<1x128xf32> -> vector<1x128xf32>
    %cst_11 = arith.constant 0.001953125 : f32
    %12 = vector.broadcast %cst_11 : f32 to vector<1x128xf32>
    %13 = arith.mulf %9, %12 : vector<1x128xf32>
    %cst_12 = arith.constant 0.001953125 : f32
    %14 = vector.broadcast %cst_12 : f32 to vector<1x128xf32>
    %15 = arith.mulf %11, %14 : vector<1x128xf32>
    %16 = arith.mulf %13, %13 : vector<1x128xf32>
    %17 = arith.subf %15, %16 : vector<1x128xf32>
    %cst_13 = arith.constant 0.000000e+00 : f32
    %18 = vector.broadcast %cst_13 : f32 to vector<1x128xf32>
    %19 = arith.maximumf %17, %18 : vector<1x128xf32>
    %cst_14 = arith.constant 9.99999974E-6 : f32
    %20 = vector.broadcast %cst_14 : f32 to vector<1x128xf32>
    %21 = arith.addf %19, %20 : vector<1x128xf32>
    %22 = math.rsqrt %21 : vector<1x128xf32>
    %23 = vector.broadcast %13 : vector<1x128xf32> to vector<32x128xf32>
    %24 = arith.subf %2, %23 : vector<32x128xf32>
    %25 = vector.broadcast %22 : vector<1x128xf32> to vector<32x128xf32>
    %26 = arith.mulf %24, %25 : vector<32x128xf32>
    %cst_15 = arith.constant 0.000000e+00 : f32
    %27 = vector.broadcast %cst_15 : f32 to vector<32x128xf32>
    %28 = arith.maximumf %26, %27 : vector<32x128xf32>
    %c0_16 = arith.constant 0 : index
    %c0_17 = arith.constant 0 : index
    %29 = vector.load %arg4[%c0_16, %c0_17] : memref<32x128xf32, #tpu.memory_space<vmem>>, vector<32x128xf32>
    tpu.vector_store %arg4[%c0_16, %c0_17], %28 {strides = array<i32>} : memref<32x128xf32, #tpu.memory_space<vmem>>, vector<32x128xf32>,
    return
  }
  func.func @transform_0(%arg0: i32) -> (i32, i32) {
    %c0_i32 = arith.constant 0 : i32
    %c0_i32_0 = arith.constant 0 : i32
    %c0_i32_1 = arith.constant 0 : i32
    return %c0_i32, %c0_i32_0 : i32, i32
  }
  func.func @transform_1(%arg0: i32) -> (i32, i32) {
    %c0_i32 = arith.constant 0 : i32
    %c0_i32_0 = arith.constant 0 : i32
    %c0_i32_1 = arith.constant 0 : i32
    return %c0_i32, %c0_i32_0 : i32, i32
  }
  func.func @transform_2(%arg0: i32) -> (i32, i32) {
    %c0_i32 = arith.constant 0 : i32
    %c0_i32_0 = arith.constant 0 : i32
    %c0_i32_1 = arith.constant 0 : i32
    return %c0_i32, %c0_i32_0 : i32, i32
  }
  func.func @transform_3(%arg0: i32) -> (i32, i32) {
    %c0_i32 = arith.constant 0 : i32
    %c0_i32_0 = arith.constant 0 : i32
    %c0_i32_1 = arith.constant 0 : i32
    return %c0_i32, %c0_i32_0 : i32, i32
  }
}

</mosaic_0001>

<llo_original>
// kernel: coord_conv_forward.1
$region0: #{coord_conv_forward.1}
  #allocation0 [shape = 'u32[]', space=smem, size = 0x4, offset = 0x4, fixed_abs, tag = 'smem constant byte address 0x4 - core index']
  #allocation1 [shape = 'u32[72,128]{1,0:T(1,128)}', space=vmem, size = 0x9000, scoped, tag = 'internal scratch']
  %s0 = inlined_call_operand.vmem [shape: bf16[32,324], index: 0, kind: input, shape index: {}]
  %s1 = inlined_call_operand.vmem [shape: bf16[324,128], index: 1, kind: input, shape index: {}]
  %s2 = inlined_call_operand.vmem [shape: f32[128,128], index: 2, kind: input, shape index: {}]
  %s3 = inlined_call_operand.vmem [shape: f32[32,128], index: 3, kind: output, shape index: {}]
  %s4 = sld [smem:[#allocation0]]
  $region22: #{coord_conv_forward.1} parent=0
    _
  %s6 = ssub.s32 1, %s4
  %s7 = scalar_select 0, %s6, %s4
  // Predicated region
  $region2: #{coord_conv_forward.1} parent=0 // pred_check
    _
  $region3: #{coord_conv_forward.1} parent=0 // pred_check_branch
    %9 = sbr.rel (0) target = $region5
  $region4: #{coord_conv_forward.1} parent=0 // pred_region
    _
  $region5: #{coord_conv_forward.1} parent=0 // pred_fallthru
    _
  // Predicated region
  $region6: #{coord_conv_forward.1} parent=0 // pred_check
    _
  $region7: #{coord_conv_forward.1} parent=0 // pred_check_branch
    %11 = sbr.rel (0) target = $region9
  $region8: #{coord_conv_forward.1} parent=0 // pred_region
    _
  $region9: #{coord_conv_forward.1} parent=0 // pred_fallthru
    _
  // Predicated region
  $region10: #{coord_conv_forward.1} parent=0 // pred_check
    _
  $region11: #{coord_conv_forward.1} parent=0 // pred_check_branch
    %13 = sbr.rel (0) target = $region13
  $region12: #{coord_conv_forward.1} parent=0 // pred_region
    _
  $region13: #{coord_conv_forward.1} parent=0 // pred_fallthru
    _
  %v15 = vld [vmem:[%s0] sm:$0xff]
  %v16 = vld [vmem:[%s0 + $0x8] sm:$0xf]
  %v17 = vld [vmem:[%s0 + $0xc] sm:$0xff]
  %v18 = vld [vmem:[%s0 + $0x14] sm:$0xf]
  %v19 = vld [vmem:[%s0 + $0x18] sm:$0xff]
  %v20 = vld [vmem:[%s0 + $0x20] sm:$0xf]
  %v21 = vld [vmem:[%s0 + $0x24] sm:$0xff]
  %v22 = vld [vmem:[%s0 + $0x2c] sm:$0xf]
  %v23 = vld [vmem:[%s1] sm:$0xf]
  %v24 = vld [vmem:[%s1 + $0x4] sm:$0xf]
  %v25 = vld [vmem:[%s1 + $0x8] sm:$0xf]
  %v26 = vld [vmem:[%s1 + $0xc] sm:$0xf]
  %v27 = vld [vmem:[%s1 + $0x10] sm:$0xf]
  %v28 = vld [vmem:[%s1 + $0x14] sm:$0xf]
  %v29 = vld [vmem:[%s1 + $0x18] sm:$0xf]
  %v30 = vld [vmem:[%s1 + $0x1c] sm:$0xf]
  %v31 = vld [vmem:[%s1 + $0x20] sm:$0xf]
  %v32 = vld [vmem:[%s1 + $0x24] sm:$0xf]
  %v33 = vld [vmem:[%s1 + $0x28] sm:$0xf]
  %v34 = vld [vmem:[%s1 + $0x2c] sm:$0xf]
  %v35 = vld [vmem:[%s1 + $0x30] sm:$0xf]
  %v36 = vld [vmem:[%s1 + $0x34] sm:$0xf]
  %v37 = vld [vmem:[%s1 + $0x38] sm:$0xf]
  %v38 = vld [vmem:[%s1 + $0x3c] sm:$0xf]
  %v39 = vld [vmem:[%s1 + $0x40] sm:$0xf]
  %v40 = vld [vmem:[%s1 + $0x44] sm:$0xf]
  %v41 = vld [vmem:[%s1 + $0x48] sm:$0xf]
  %v42 = vld [vmem:[%s1 + $0x4c] sm:$0xf]
  %v43 = vld [vmem:[%s1 + $0x50] sm:$0xf]
  %v44 = vld [vmem:[%s1 + $0x54] sm:$0xf]
  %v45 = vld [vmem:[%s1 + $0x58] sm:$0xf]
  %v46 = vld [vmem:[%s1 + $0x5c] sm:$0xf]
  %v47 = vld [vmem:[%s1 + $0x60] sm:$0xf]
  %v48 = vld [vmem:[%s1 + $0x64] sm:$0xf]
  %v49 = vld [vmem:[%s1 + $0x68] sm:$0xf]
  %v50 = vld [vmem:[%s1 + $0x6c] sm:$0xf]
  %v51 = vld [vmem:[%s1 + $0x70] sm:$0xf]
  %v52 = vld [vmem:[%s1 + $0x74] sm:$0xf]
  %v53 = vld [vmem:[%s1 + $0x78] sm:$0xf]
  %v54 = vld [vmem:[%s1 + $0x7c] sm:$0xf]
  %v55 = vld [vmem:[%s1 + $0x80] sm:$0xf]
  %v56 = vld [vmem:[%s1 + $0x84] sm:$0xf]
  %v57 = vld [vmem:[%s1 + $0x88] sm:$0xf]
  %v58 = vld [vmem:[%s1 + $0x8c] sm:$0xf]
  %v59 = vld [vmem:[%s1 + $0x90] sm:$0xf]
  %v60 = vld [vmem:[%s1 + $0x94] sm:$0xf]
  %v61 = vld [vmem:[%s1 + $0x98] sm:$0xf]
  %v62 = vld [vmem:[%s1 + $0x9c] sm:$0xf]
  %v63 = vld [vmem:[%s1 + $0xa0] sm:$0x3]
  %v72 = vunpack.c.l.b16 %v15
  %v73 = vunpack.c.h.b16 %v15
  %v74 = vunpack.c.l.b16 %v16
  %v75 = vunpack.c.l.b16 %v17
  %v76 = vunpack.c.h.b16 %v17
  %v77 = vunpack.c.l.b16 %v18
  %v78 = vunpack.c.l.b16 %v19
  %v79 = vunpack.c.h.b16 %v19
  %v80 = vunpack.c.l.b16 %v20
  %v81 = vunpack.c.l.b16 %v21
  %v82 = vunpack.c.h.b16 %v21
  %v83 = vunpack.c.l.b16 %v22
  %v84 = vpack.c.b16 %v75, %v72
  %v85 = vpack.c.b16 %v76, %v73
  %v86 = vpack.c.b16 %v77, %v74
  %v87 = vpack.c.b16 %v81, %v78
  %v88 = vpack.c.b16 %v82, %v79
  %v89 = vpack.c.b16 %v83, %v80
  %v135 = vunpack.c.l.b16 %v23
  %v136 = vunpack.c.l.b16 %v24
  %v137 = vunpack.c.l.b16 %v25
  %v138 = vunpack.c.l.b16 %v26
  %v139 = vunpack.c.l.b16 %v27
  %v140 = vunpack.c.l.b16 %v28
  %v141 = vunpack.c.l.b16 %v29
  %v142 = vunpack.c.l.b16 %v30
  %v143 = vunpack.c.l.b16 %v31
  %v144 = vunpack.c.l.b16 %v32
  %v145 = vunpack.c.l.b16 %v33
  %v146 = vunpack.c.l.b16 %v34
  %v147 = vunpack.c.l.b16 %v35
  %v148 = vunpack.c.l.b16 %v36
  %v149 = vunpack.c.l.b16 %v37
  %v150 = vunpack.c.l.b16 %v38
  %v151 = vunpack.c.l.b16 %v39
  %v152 = vunpack.c.l.b16 %v40
  %v153 = vunpack.c.l.b16 %v41
  %v154 = vunpack.c.l.b16 %v42
  %v155 = vunpack.c.l.b16 %v43
  %v156 = vunpack.c.l.b16 %v44
  %v157 = vunpack.c.l.b16 %v45
  %v158 = vunpack.c.l.b16 %v46
  %v159 = vunpack.c.l.b16 %v47
  %v160 = vunpack.c.l.b16 %v48
  %v161 = vunpack.c.l.b16 %v49
  %v162 = vunpack.c.l.b16 %v50
  %v163 = vunpack.c.l.b16 %v51
  %v164 = vunpack.c.l.b16 %v52
  %v165 = vunpack.c.l.b16 %v53
  %v166 = vunpack.c.l.b16 %v54
  %v167 = vunpack.c.l.b16 %v55
  %v168 = vunpack.c.l.b16 %v56
  %v169 = vunpack.c.l.b16 %v57
  %v170 = vunpack.c.l.b16 %v58
  %v171 = vunpack.c.l.b16 %v59
  %v172 = vunpack.c.l.b16 %v60
  %v173 = vunpack.c.l.b16 %v61
  %v174 = vunpack.c.l.b16 %v62
  %v175 = vunpack.c.l.b16 %v63
  %v176 = vpack.c.b16 %v136, %v135
  %v177 = vpack.c.b16 %v138, %v137
  %v178 = vpack.c.b16 %v140, %v139
  %v179 = vpack.c.b16 %v142, %v141
  %v180 = vpack.c.b16 %v144, %v143
  %v181 = vpack.c.b16 %v146, %v145
  %v182 = vpack.c.b16 %v148, %v147
  %v183 = vpack.c.b16 %v150, %v149
  %v184 = vpack.c.b16 %v152, %v151
  %v185 = vpack.c.b16 %v154, %v153
  %v186 = vpack.c.b16 %v156, %v155
  %v187 = vpack.c.b16 %v158, %v157
  %v188 = vpack.c.b16 %v160, %v159
  %v189 = vpack.c.b16 %v162, %v161
  %v190 = vpack.c.b16 %v164, %v163
  %v191 = vpack.c.b16 %v166, %v165
  %v192 = vpack.c.b16 %v168, %v167
  %v193 = vpack.c.b16 %v170, %v169
  %v194 = vpack.c.b16 %v172, %v171
  %v195 = vpack.c.b16 %v174, %v173
  %v196 = vpack.c.b16 %v175, %v175
  %vm217 = vcmask 556032
  %v219 = vsel %vm217, %v86, 0
  %v222 = vsel %vm217, %v89, 0
  %vm224 = vcmask 1041408
  %v226 = vsel %vm224, %v196, 0
  %228 = vmatpush.bf16.msra.mxu0 %v183
  %229 = vmatpush.bf16.msra.mxu0 %v182
  %230 = vmatpush.bf16.msra.mxu0 %v181
  %231 = vmatpush.bf16.msra.mxu0 %v180
  %232 = vmatpush.bf16.msra.mxu0 %v179
  %233 = vmatpush.bf16.msra.mxu0 %v178
  %234 = vmatpush.bf16.msra.mxu0 %v177
  %235 = vmatpush.bf16.msra.mxu0 %v176
  %236 = vmatmul.bf16.gmra.mxu0 %v84
  %v237 = vpop.f32.mrf.mxu0
  %v238 = vadd.f32 0.0, %v237
  %v239 = vpop.f32.mrf.mxu0
  %v240 = vadd.f32 0.0, %v239
  %241 = vmatmul.bf16.gmra.mxu0 %v87
  %v242 = vpop.f32.mrf.mxu0
  %v243 = vadd.f32 0.0, %v242
  %v244 = vpop.f32.mrf.mxu0
  %v245 = vadd.f32 0.0, %v244
  %246 = vdwg.mxu0
  %247 = vmatpush.bf16.msra.mxu0 %v191
  %248 = vmatpush.bf16.msra.mxu0 %v190
  %249 = vmatpush.bf16.msra.mxu0 %v189
  %250 = vmatpush.bf16.msra.mxu0 %v188
  %251 = vmatpush.bf16.msra.mxu0 %v187
  %252 = vmatpush.bf16.msra.mxu0 %v186
  %253 = vmatpush.bf16.msra.mxu0 %v185
  %254 = vmatpush.bf16.msra.mxu0 %v184
  %255 = vmatmul.bf16.gmra.mxu0 %v85
  %v256 = vpop.f32.mrf.mxu0
  %v257 = vadd.f32 %v238, %v256
  %v258 = vpop.f32.mrf.mxu0
  %v259 = vadd.f32 %v240, %v258
  %260 = vmatmul.bf16.gmra.mxu0 %v88
  %v261 = vpop.f32.mrf.mxu0
  %v262 = vadd.f32 %v243, %v261
  %v263 = vpop.f32.mrf.mxu0
  %v264 = vadd.f32 %v245, %v263
  %265 = vdwg.mxu0
  %266 = vmatpush.bf16.msra.mxu0 0
  %267 = vmatpush.bf16.msra.mxu0 0
  %268 = vmatpush.bf16.msra.mxu0 0
  %269 = vmatpush.bf16.msra.mxu0 %v226
  %270 = vmatpush.bf16.msra.mxu0 %v195
  %271 = vmatpush.bf16.msra.mxu0 %v194
  %272 = vmatpush.bf16.msra.mxu0 %v193
  %273 = vmatpush.bf16.msra.mxu0 %v192
  %274 = vmatmul.bf16.gmra.mxu0 %v219
  %v275 = vpop.f32.mrf.mxu0
  %v276 = vadd.f32 %v257, %v275
  %v277 = vpop.f32.mrf.mxu0
  %v278 = vadd.f32 %v259, %v277
  %279 = vmatmul.bf16.gmra.mxu0 %v222
  %v280 = vpop.f32.mrf.mxu0
  %v281 = vadd.f32 %v262, %v280
  %v282 = vpop.f32.mrf.mxu0
  %v283 = vadd.f32 %v264, %v282
  %284 = vdwg.mxu0
  %v285 = vadd.f32 %v276, %v278
  %v286 = vadd.f32 %v285, %v281
  %v287 = vadd.f32 %v286, %v283
  %v288 = vrot.slane %v287, 4
  %v289 = vadd.f32 %v287, %v288
  %v290 = vrot.slane %v289, 2
  %v291 = vadd.f32 %v289, %v290
  %v292 = vrot.slane %v291, 1
  %v293 = vadd.f32 %v291, %v292
  %v294 = vmul.f32 %v276, %v276
  %v295 = vmul.f32 %v278, %v278
  %v296 = vmul.f32 %v281, %v281
  %v297 = vmul.f32 %v283, %v283
  %v298 = vadd.f32 %v294, %v295
  %v299 = vadd.f32 %v298, %v296
  %v300 = vadd.f32 %v299, %v297
  %v301 = vrot.slane %v300, 4
  %v302 = vadd.f32 %v300, %v301
  %v303 = vrot.slane %v302, 2
  %v304 = vadd.f32 %v302, %v303
  %v305 = vrot.slane %v304, 1
  %v306 = vadd.f32 %v304, %v305
  %v307 = vld [vmem:[%s2] sm:$0xff]
  %v308 = vld [vmem:[%s2 + $0x8] sm:$0xff]
  %v309 = vld [vmem:[%s2 + $0x10] sm:$0xff]
  %v310 = vld [vmem:[%s2 + $0x18] sm:$0xff]
  %v311 = vld [vmem:[%s2 + $0x20] sm:$0xff]
  %v312 = vld [vmem:[%s2 + $0x28] sm:$0xff]
  %v313 = vld [vmem:[%s2 + $0x30] sm:$0xff]
  %v314 = vld [vmem:[%s2 + $0x38] sm:$0xff]
  %v315 = vld [vmem:[%s2 + $0x40] sm:$0xff]
  %v316 = vld [vmem:[%s2 + $0x48] sm:$0xff]
  %v317 = vld [vmem:[%s2 + $0x50] sm:$0xff]
  %v318 = vld [vmem:[%s2 + $0x58] sm:$0xff]
  %v319 = vld [vmem:[%s2 + $0x60] sm:$0xff]
  %v320 = vld [vmem:[%s2 + $0x68] sm:$0xff]
  %v321 = vld [vmem:[%s2 + $0x70] sm:$0xff]
  %v322 = vld [vmem:[%s2 + $0x78] sm:$0xff]
  %323 = vmatpush.msra.mxu0 %v322
  %324 = vmatpush.msra.mxu0 %v321
  %325 = vmatpush.msra.mxu0 %v320
  %326 = vmatpush.msra.mxu0 %v319
  %327 = vmatpush.msra.mxu0 %v318
  %328 = vmatpush.msra.mxu0 %v317
  %329 = vmatpush.msra.mxu0 %v316
  %330 = vmatpush.msra.mxu0 %v315
  %331 = vmatpush.msra.mxu0 %v314
  %332 = vmatpush.msra.mxu0 %v313
  %333 = vmatpush.msra.mxu0 %v312
  %334 = vmatpush.msra.mxu0 %v311
  %335 = vmatpush.msra.mxu0 %v310
  %336 = vmatpush.msra.mxu0 %v309
  %337 = vmatpush.msra.mxu0 %v308
  %338 = vmatpush.msra.mxu0 %v307
  %339 = vmatmul.f32.gmra.mxu0 %v293
  %v340 = vpop.f32.mrf.mxu0
  %v341 = vadd.f32 0.0, %v340
  %342 = vdwg.mxu0
  %343 = vmatpush.msra.mxu0 %v322
  %344 = vmatpush.msra.mxu0 %v321
  %345 = vmatpush.msra.mxu0 %v320
  %346 = vmatpush.msra.mxu0 %v319
  %347 = vmatpush.msra.mxu0 %v318
  %348 = vmatpush.msra.mxu0 %v317
  %349 = vmatpush.msra.mxu0 %v316
  %350 = vmatpush.msra.mxu0 %v315
  %351 = vmatpush.msra.mxu0 %v314
  %352 = vmatpush.msra.mxu0 %v313
  %353 = vmatpush.msra.mxu0 %v312
  %354 = vmatpush.msra.mxu0 %v311
  %355 = vmatpush.msra.mxu0 %v310
  %356 = vmatpush.msra.mxu0 %v309
  %357 = vmatpush.msra.mxu0 %v308
  %358 = vmatpush.msra.mxu0 %v307
  %359 = vmatmul.f32.gmra.mxu0 %v306
  %v360 = vpop.f32.mrf.mxu0
  %v361 = vadd.f32 0.0, %v360
  %362 = vdwg.mxu0
  %v363 = vmul.f32 %v341, 0.001953125
  %v364 = vmul.f32 %v361, 0.001953125
  %v365 = vmul.f32 %v363, %v363
  %v366 = vsub.f32 %v364, %v365
  %v367 = vmax.f32 %v366, 0.0
  %v368 = vadd.f32 %v367, 1e-05
  %v369 = vrsqrt.pop %v368
  %v370 = vmul.f32 %v369, %v368
  %v371 = vmul.f32 %v370, %v369
  %v372 = vmul.f32 0.5, %v371
  %v373 = vsub.f32 1.5, %v372
  %v374 = vmul.f32 %v369, %v373
  %vm375 = vweird.f32 %v368
  %vm376 = vweird.f32 %v369
  %vm377 = vmor %vm375, %vm376
  %v378 = vsel %vm377, %v369, %v374
  %v379 = vperm.slane %v363, 0
  %v380 = vsub.f32 %v276, %v379
  %v381 = vsub.f32 %v278, %v379
  %v382 = vsub.f32 %v281, %v379
  %v383 = vsub.f32 %v283, %v379
  %v384 = vperm.slane %v378, 0
  %v385 = vmul.f32 %v380, %v384
  %v386 = vmul.f32 %v381, %v384
  %v387 = vmul.f32 %v382, %v384
  %v388 = vmul.f32 %v383, %v384
  %v389 = vmax.f32 %v385, 0.0
  %v390 = vmax.f32 %v386, 0.0
  %v391 = vmax.f32 %v387, 0.0
  %v392 = vmax.f32 %v388, 0.0
  %393 = vst [vmem:[%s3] sm:$0xff] %v389
  %394 = vst [vmem:[%s3 + $0x8] sm:$0xff] %v390
  %395 = vst [vmem:[%s3 + $0x10] sm:$0xff] %v391
  %396 = vst [vmem:[%s3 + $0x18] sm:$0xff] %v392
  // Predicated region
  $region14: #{coord_conv_forward.1} parent=0 // pred_check
    _
  $region15: #{coord_conv_forward.1} parent=0 // pred_check_branch
    %398 = sbr.rel (0) target = $region17
  $region16: #{coord_conv_forward.1} parent=0 // pred_region
    _
  $region17: #{coord_conv_forward.1} parent=0 // pred_fallthru
    _
  // Predicated region
  $region18: #{coord_conv_forward.1} parent=0 // pred_check
    _
  $region19: #{coord_conv_forward.1} parent=0 // pred_check_branch
    %400 = sbr.rel (0) target = $region21
  $region20: #{coord_conv_forward.1} parent=0 // pred_region
    _
  $region21: #{coord_conv_forward.1} parent=0 // pred_fallthru
    _

</llo_original>
